<compile_context>
chip_gen: v7x
topology: tpu7x:2x2x1
jax: 0.10.0
libtpu: 0.0.40
codegen_flags: <defaults>
</compile_context>

<pallas_src>
import functools

import numpy as np
import jax
import jax.numpy as jnp
from jax.experimental import pallas as pl
from jax.experimental.pallas import tpu as pltpu


# ----------------------------------------------------------------------------
# Pallas kernel: in-kernel edge replication (one-hot MXU matmul) + fused product
# + degree segment-sum (one-hot MXU matmul, f32 accumulation) + weight scaling.
# ----------------------------------------------------------------------------
def _scalar_so3_cw_kernel(feat_ref, edge_ref, rep_ref, s2_ref, w_ref, out_ref):
    # feat_ref: (B_blk, M_in*C)   lane index = m*C + c
    # edge_ref: (B_blk, M_in)     natural-size edge scalars (no replicated slab)
    # rep_ref:  (M_in, M_in*C)    one-hot channel-replication matrix (grid-invariant)
    # s2_ref:   (M_in*C, D*C)     one-hot degree segment-sum matrix (grid-invariant)
    # w_ref:    (1, D*C)          flattened per-(degree, channel) weight (grid-invariant)
    # out_ref:  (B_blk, D*C)      lane index = d*C + c
    f32 = jnp.float32
    # Replicate edge over channels on the MXU: e_rep[b, m*C + c] = edge[b, m] (exact).
    e_rep = jnp.dot(edge_ref[...], rep_ref[...], preferred_element_type=f32)
    prod = (feat_ref[...].astype(f32) * e_rep).astype(feat_ref.dtype)
    # Degree-wise sum over orders: one-hot MXU matmul with f32 accumulation.
    d = jnp.dot(prod, s2_ref[...], preferred_element_type=f32)
    out_ref[...] = (d * w_ref[...].astype(f32)).astype(out_ref.dtype)


def _pick_batch_block(B, feat_row_bytes, *, target_bytes=4 << 20):
    """Batch rows per grid step.

    Aims for ~target_bytes of feature per step (so per-step DMA dwarfs the
    ~0.35 us fixed pipeline cost), keeps the sublane dim a multiple of 8 (or the
    full batch, which is always a legal block), and leaves >= 2 grid steps when B
    allows so both v7x TensorCores get work on the "parallel" axis (the extra
    step is essentially free on single-TensorCore v5e/v6e)."""
    if B <= 8:
        return B
    rows = min(B, max(8, target_bytes // max(1, feat_row_bytes)))
    rows -= rows % 8
    rows = max(rows, 8)
    if rows >= B and B >= 16:
        rows = -(-B // 2)            # split once -> 2 grid steps for v7x megacore
        rows += (-rows) % 8          # keep sublane dim a multiple of 8
        rows = min(rows, B)
    return max(rows, 8)


def scalar_so3_linear_cw(feature, edge_feat, weight, L_in):
    """channel_wise=True forward of ScalarSO3Linear."""
    B, M_in, C = feature.shape
    l_min, l_max = L_in
    D = l_max - l_min + 1
    assert weight.shape == (1, D, C)
    assert sum(2 * l + 1 for l in range(l_min, l_max + 1)) == M_in
    dtype = feature.dtype
    MC, DC = M_in * C, D * C
    itemsize = np.dtype(dtype).itemsize

    # Degree index of every order m.
    deg_of_m = np.zeros(M_in, dtype=np.int64)
    off = 0
    for d_idx, l in enumerate(range(l_min, l_max + 1)):
        n = 2 * l + 1
        deg_of_m[off:off + n] = d_idx
        off += n

    # One-hot channel-replication matrix: rep[m, m*C + c] = 1.
    rep_np = np.zeros((M_in, MC), dtype=np.float32)
    # One-hot degree segment-sum matrix: s2[m*C + c, deg(m)*C + c] = 1.
    s2_np = np.zeros((MC, DC), dtype=np.float32)
    cols = np.arange(C)
    for m in range(M_in):
        rep_np[m, m * C + cols] = 1.0
        s2_np[m * C + cols, deg_of_m[m] * C + cols] = 1.0
    rep = jnp.asarray(rep_np, dtype=dtype)
    s2 = jnp.asarray(s2_np, dtype=dtype)

    # Free, layout-preserving reshapes (no transposes, no replicated HBM slabs).
    feat2 = feature.reshape(B, MC)                # lane = m*C + c
    wflat = weight.reshape(1, DC).astype(dtype)   # lane = d*C + c, grid-invariant

    B_blk = _pick_batch_block(B, MC * itemsize)
    grid = (pl.cdiv(B, B_blk),)

    out2 = pl.pallas_call(
        _scalar_so3_cw_kernel,
        out_shape=jax.ShapeDtypeStruct((B, DC), dtype),
        grid_spec=pl.GridSpec(
            grid=grid,
            in_specs=[
                pl.BlockSpec((B_blk, MC), lambda i: (i, 0)),    # feature (read once)
                pl.BlockSpec((B_blk, M_in), lambda i: (i, 0)),  # edge at natural size
                pl.BlockSpec((M_in, MC), lambda i: (0, 0)),     # REP  (grid-invariant)
                pl.BlockSpec((MC, DC), lambda i: (0, 0)),       # S2   (grid-invariant)
                pl.BlockSpec((1, DC), lambda i: (0, 0)),        # weight (grid-invariant)
            ],
            out_specs=pl.BlockSpec((B_blk, DC), lambda i: (i, 0)),
        ),
        compiler_params=pltpu.CompilerParams(
            dimension_semantics=("parallel",),
            # Comfortably above the double-buffered working set (~3 blocks x2),
            # below the v7x 64 MiB physical VMEM; fine on v5e/v6e (128 MiB).
            vmem_limit_bytes=48 * 1024 * 1024,
        ),
        cost_estimate=pl.CostEstimate(
            flops=2 * B * M_in * MC + B * MC + 2 * B * MC * DC + B * DC,
            transcendentals=0,
            bytes_accessed=(B * MC + B * M_in + rep_np.size + s2_np.size
                            + DC + B * DC) * itemsize,
        ),
    )(feat2, edge_feat, rep, s2, wflat)

    # Free contiguous reshape back to the module's (B, D, C) layout.
    return out2.reshape(B, D, C)


# ----------------------------------------------------------------------------
# Pure-JAX reference of the PyTorch forward (dot over orders per degree, * weight).
# ----------------------------------------------------------------------------
def scalar_so3_linear_cw_ref(feature, edge_feat, weight, L_in):
    l_min, l_max = L_in
    prod = feature * edge_feat[..., None]            # (B, M_in, C)
    segs, off = [], 0
    for l in range(l_min, l_max + 1):
        n = 2 * l + 1
        segs.append(prod[:, off:off + n, :].sum(axis=1))
        off += n
    d = jnp.stack(segs, axis=1)                      # (B, D, C)
    return d * weight                                # broadcast (1, D, C)


if __name__ == "__main__":
    key = jax.random.PRNGKey(0)

    # Config 1: B=32, C=8, L=(0,3) -> M_in=16, D=4; lane width M_in*C = 128 (dense),
    # 2 "parallel" grid steps.
    B, C, L_in = 32, 8, (0, 3)
    M_in = sum(2 * l + 1 for l in range(L_in[0], L_in[1] + 1))   # 16
    D = L_in[1] - L_in[0] + 1                                    # 4
    k1, k2, k3, key = jax.random.split(key, 4)
    feature = jax.random.normal(k1, (B, M_in, C), dtype=jnp.float32)
    edge_feat = jax.random.normal(k2, (B, M_in), dtype=jnp.float32)
    weight = jax.random.normal(k3, (1, D, C), dtype=jnp.float32)  # nn.Parameter(randn(1,D,C))

    fwd1 = jax.jit(functools.partial(scalar_so3_linear_cw, L_in=L_in))
    out = jax.block_until_ready(fwd1(feature, edge_feat, weight))
    ref = scalar_so3_linear_cw_ref(feature, edge_feat, weight, L_in)
    np.testing.assert_allclose(np.asarray(out), np.asarray(ref), rtol=1e-4, atol=1e-5)

    # Config 2: tiny shapes, l_min > 0, lane width below 128 (full-dim blocks).
    B2, C2, L2 = 2, 4, (1, 2)
    M2 = sum(2 * l + 1 for l in range(L2[0], L2[1] + 1))          # 8
    D2 = L2[1] - L2[0] + 1                                        # 2
    k1, k2, k3, key = jax.random.split(key, 4)
    f2 = jax.random.normal(k1, (B2, M2, C2), dtype=jnp.float32)
    e2 = jax.random.normal(k2, (B2, M2), dtype=jnp.float32)
    w2 = jax.random.normal(k3, (1, D2, C2), dtype=jnp.float32)

    fwd2 = jax.jit(functools.partial(scalar_so3_linear_cw, L_in=L2))
    out2 = jax.block_until_ready(fwd2(f2, e2, w2))
    ref2 = scalar_so3_linear_cw_ref(f2, e2, w2, L2)
    np.testing.assert_allclose(np.asarray(out2), np.asarray(ref2), rtol=1e-4, atol=1e-5)

    print("KERNEL_OK")
</pallas_src>

<mosaic_0001>
module attributes {stable_mosaic.version = 11 : i64} {
  func.func @_scalar_so3_cw_kernel(%arg0: i32, %arg1: memref<16x128xf32, #tpu.memory_space<vmem>>, %arg2: memref<16x16xf32, #tpu.memory_space<vmem>>, %arg3: memref<16x128xf32, #tpu.memory_space<vmem>>, %arg4: memref<128x32xf32, #tpu.memory_space<vmem>>, %arg5: memref<1x32xf32, #tpu.memory_space<vmem>>, %arg6: memref<16x32xf32, #tpu.memory_space<vmem>>) attributes {dimension_semantics = [#tpu.dimension_semantics<parallel>], iteration_bounds = array<i64: 2>, scalar_prefetch = 0 : i64, scratch_operands = 0 : i64, tpu.core_type = #tpu.core_type<tc>, window_params = [{transform_indices = @transform_0, window_bounds = array<i64: 16, 128>}, {transform_indices = @transform_1, window_bounds = array<i64: 16, 16>}, {pipeline_mode = #tpu.pipeline_mode<synchronous>, transform_indices = @transform_2, window_bounds = array<i64: 16, 128>}, {pipeline_mode = #tpu.pipeline_mode<synchronous>, transform_indices = @transform_3, window_bounds = array<i64: 128, 32>}, {pipeline_mode = #tpu.pipeline_mode<synchronous>, transform_indices = @transform_4, window_bounds = array<i64: 1, 32>}, {transform_indices = @transform_5, window_bounds = array<i64: 16, 32>}]} {
    %c0 = arith.constant 0 : index
    %c0_0 = arith.constant 0 : index
    %0 = vector.load %arg2[%c0, %c0_0] : memref<16x16xf32, #tpu.memory_space<vmem>>, vector<16x16xf32>
    %c0_1 = arith.constant 0 : index
    %c0_2 = arith.constant 0 : index
    %1 = vector.load %arg3[%c0_1, %c0_2] : memref<16x128xf32, #tpu.memory_space<vmem>>, vector<16x128xf32>
    %cst = arith.constant dense<0.000000e+00> : vector<16x128xf32>
    %2 = tpu.matmul %0, %1, %cst {dimension_numbers = #tpu.dot_dimension_numbers<[1], [0], [0], [1], [0, 0, 1, 1], [], []>} : vector<16x16xf32>, vector<16x128xf32>, vector<16x128xf32> -> vector<16x128xf32>
    %c0_3 = arith.constant 0 : index
    %c0_4 = arith.constant 0 : index
    %3 = vector.load %arg1[%c0_3, %c0_4] : memref<16x128xf32, #tpu.memory_space<vmem>>, vector<16x128xf32>
    %4 = arith.mulf %3, %2 : vector<16x128xf32>
    %c0_5 = arith.constant 0 : index
    %c0_6 = arith.constant 0 : index
    %5 = vector.load %arg4[%c0_5, %c0_6] : memref<128x32xf32, #tpu.memory_space<vmem>>, vector<128x32xf32>
    %cst_7 = arith.constant dense<0.000000e+00> : vector<16x32xf32>
    %6 = tpu.matmul %4, %5, %cst_7 {dimension_numbers = #tpu.dot_dimension_numbers<[1], [0], [0], [1], [0, 0, 1, 1], [], []>} : vector<16x128xf32>, vector<128x32xf32>, vector<16x32xf32> -> vector<16x32xf32>
    %c0_8 = arith.constant 0 : index
    %c0_9 = arith.constant 0 : index
    %7 = vector.load %arg5[%c0_8, %c0_9] : memref<1x32xf32, #tpu.memory_space<vmem>>, vector<1x32xf32>
    %8 = vector.broadcast %7 : vector<1x32xf32> to vector<16x32xf32>
    %9 = arith.mulf %6, %8 : vector<16x32xf32>
    %c0_10 = arith.constant 0 : index
    %c0_11 = arith.constant 0 : index
    %10 = vector.load %arg6[%c0_10, %c0_11] : memref<16x32xf32, #tpu.memory_space<vmem>>, vector<16x32xf32>
    tpu.vector_store %arg6[%c0_10, %c0_11], %9 {strides = array<i32>} : memref<16x32xf32, #tpu.memory_space<vmem>>, vector<16x32xf32>,
    return
  }
  func.func @transform_0(%arg0: i32) -> (i32, i32) {
    %c0_i32 = arith.constant 0 : i32
    %c0_i32_0 = arith.constant 0 : i32
    return %arg0, %c0_i32 : i32, i32
  }
  func.func @transform_1(%arg0: i32) -> (i32, i32) {
    %c0_i32 = arith.constant 0 : i32
    %c0_i32_0 = arith.constant 0 : i32
    return %arg0, %c0_i32 : i32, i32
  }
  func.func @transform_2(%arg0: i32) -> (i32, i32) {
    %c0_i32 = arith.constant 0 : i32
    %c0_i32_0 = arith.constant 0 : i32
    %c0_i32_1 = arith.constant 0 : i32
    return %c0_i32, %c0_i32_0 : i32, i32
  }
  func.func @transform_3(%arg0: i32) -> (i32, i32) {
    %c0_i32 = arith.constant 0 : i32
    %c0_i32_0 = arith.constant 0 : i32
    %c0_i32_1 = arith.constant 0 : i32
    return %c0_i32, %c0_i32_0 : i32, i32
  }
  func.func @transform_4(%arg0: i32) -> (i32, i32) {
    %c0_i32 = arith.constant 0 : i32
    %c0_i32_0 = arith.constant 0 : i32
    %c0_i32_1 = arith.constant 0 : i32
    return %c0_i32, %c0_i32_0 : i32, i32
  }
  func.func @transform_5(%arg0: i32) -> (i32, i32) {
    %c0_i32 = arith.constant 0 : i32
    %c0_i32_0 = arith.constant 0 : i32
    return %arg0, %c0_i32 : i32, i32
  }
}

</mosaic_0001>

<llo_original>
// kernel: scalar_so3_linear_cw.1
$region0: #{scalar_so3_linear_cw.1}
  #allocation0 [shape = 'u32[]', space=smem, size = 0x4, offset = 0x4, fixed_abs, tag = 'smem constant byte address 0x4 - core index']
  #allocation1 [shape = 'u32[144,128]{1,0:T(1,128)}', space=vmem, size = 0x12000, scoped, tag = 'internal scratch']
  %s0 = inlined_call_operand.vmem [shape: f32[32,128], index: 0, kind: input, shape index: {}]
  %s1 = inlined_call_operand.vmem [shape: f32[32,16], index: 1, kind: input, shape index: {}]
  %s2 = inlined_call_operand.vmem [shape: f32[16,128], index: 2, kind: input, shape index: {}]
  %s3 = inlined_call_operand.vmem [shape: f32[128,32], index: 3, kind: input, shape index: {}]
  %s4 = inlined_call_operand.vmem [shape: f32[1,32], index: 4, kind: input, shape index: {}]
  %s5 = inlined_call_operand.vmem [shape: f32[32,32], index: 5, kind: output, shape index: {}]
  %s6 = sld [smem:[#allocation0]]
  $region53: #{scalar_so3_linear_cw.1} parent=0
    _
  %s8 = ssub.s32 1, %s6
  %s9 = scalar_select 0, %s8, %s6
  loop: start=0, step=1, limit=4
  $region2: #{scalar_so3_linear_cw.1} parent=0 // loop_pre_header
    _
  $region3: #{scalar_so3_linear_cw.1} parent=0 // loop_header
    %s11 = sphi 0, %s15
    %p12 = scmp.ge.s32.totalorder %s11, 4
    %s21 = sphi 0, %s23
    %s24 = sphi 0, %s21
    %s25 = sphi 0, %s24
    %s41 = sphi 0, %s25
    %s47 = sphi 0, %s49
    %s50 = sphi 0, %s47
    %s51 = sphi 0, %s50
    %s67 = sphi 0, %s51
    %s71 = sphi 0, %s71
    %s73 = sphi 0, %s71
    %s74 = sphi 0, %s73
    %s88 = sphi 0, %s74
    %s92 = sphi 0, %s92
    %s94 = sphi 0, %s92
    %s95 = sphi 0, %s94
    %s109 = sphi 0, %s95
    %s113 = sphi 0, %s113
    %s115 = sphi 0, %s113
    %s116 = sphi 0, %s115
    %s130 = sphi 0, %s116
    %s136 = sphi 0, %s138
    %s139 = sphi 0, %s136
    %s140 = sphi 0, %s139
    %s156 = sphi 0, %s140
  $region4: #{scalar_so3_linear_cw.1} parent=0 // loop_header_branch
    %14 = sbr.rel (%p12) target = $region8
  $region5: #{scalar_so3_linear_cw.1} parent=0 // loop_body
    %s16 = ssub.s32 %s11, 1
    %s17 = ssub.s32 %s11, 2
    %s18 = sadd.s32 %s11, 1
    %s19 = ssub.s32 %s11, %s18
    %p20 = scmp.eq.s32.totalorder %s19, 0
    %s22 = sadd.s32 %s21, 1
    %s23 = scalar_select %p20, %s21, %s22
    %p26 = pneg %p20
    %p27 = scmp.eq.s32.totalorder %s11, 1
    %p28 = por %p26, %p27
    %p29 = scmp.ne.s32.totalorder %s21, %s24
    %p30 = scmp.eq.s32.totalorder %s11, 0
    %p31 = por %p29, %p30
    %p32 = scmp.ne.s32.totalorder %s21, %s24
    %p33 = scmp.eq.s32.totalorder %s16, 1
    %p34 = por %p32, %p33
    %p35 = scmp.ne.s32.totalorder %s24, %s25
    %p36 = scmp.eq.s32.totalorder %s16, 0
    %p37 = por %p35, %p36
    %p38 = scmp.ne.s32.totalorder %s24, %s25
    %p39 = scmp.eq.s32.totalorder %s17, 1
    %p40 = por %p38, %p39
    %p42 = scmp.ne.s32.totalorder %s25, %s41
    %p43 = scmp.eq.s32.totalorder %s17, 0
    %p44 = por %p42, %p43
    %s45 = ssub.s32 %s11, %s18
    %p46 = scmp.eq.s32.totalorder %s45, 0
    %s48 = sadd.s32 %s47, 1
    %s49 = scalar_select %p46, %s47, %s48
    %p52 = pneg %p46
    %p53 = scmp.eq.s32.totalorder %s11, 1
    %p54 = por %p52, %p53
    %p55 = scmp.ne.s32.totalorder %s47, %s50
    %p56 = scmp.eq.s32.totalorder %s11, 0
    %p57 = por %p55, %p56
    %p58 = scmp.ne.s32.totalorder %s47, %s50
    %p59 = scmp.eq.s32.totalorder %s16, 1
    %p60 = por %p58, %p59
    %p61 = scmp.ne.s32.totalorder %s50, %s51
    %p62 = scmp.eq.s32.totalorder %s16, 0
    %p63 = por %p61, %p62
    %p64 = scmp.ne.s32.totalorder %s50, %s51
    %p65 = scmp.eq.s32.totalorder %s17, 1
    %p66 = por %p64, %p65
    %p68 = scmp.ne.s32.totalorder %s51, %s67
    %p69 = scmp.eq.s32.totalorder %s17, 0
    %p70 = por %p68, %p69
    %s72 = sadd.s32 %s71, 1
    %p75 = scmp.eq.s32.totalorder %s11, 1
    %p76 = scmp.ne.s32.totalorder %s71, %s73
    %p77 = scmp.eq.s32.totalorder %s11, 0
    %p78 = por %p76, %p77
    %p79 = scmp.ne.s32.totalorder %s71, %s73
    %p80 = scmp.eq.s32.totalorder %s16, 1
    %p81 = por %p79, %p80
    %p82 = scmp.ne.s32.totalorder %s73, %s74
    %p83 = scmp.eq.s32.totalorder %s16, 0
    %p84 = por %p82, %p83
    %p85 = scmp.ne.s32.totalorder %s73, %s74
    %p86 = scmp.eq.s32.totalorder %s17, 1
    %p87 = por %p85, %p86
    %p89 = scmp.ne.s32.totalorder %s74, %s88
    %p90 = scmp.eq.s32.totalorder %s17, 0
    %p91 = por %p89, %p90
    %s93 = sadd.s32 %s92, 1
    %p96 = scmp.eq.s32.totalorder %s11, 1
    %p97 = scmp.ne.s32.totalorder %s92, %s94
    %p98 = scmp.eq.s32.totalorder %s11, 0
    %p99 = por %p97, %p98
    %p100 = scmp.ne.s32.totalorder %s92, %s94
    %p101 = scmp.eq.s32.totalorder %s16, 1
    %p102 = por %p100, %p101
    %p103 = scmp.ne.s32.totalorder %s94, %s95
    %p104 = scmp.eq.s32.totalorder %s16, 0
    %p105 = por %p103, %p104
    %p106 = scmp.ne.s32.totalorder %s94, %s95
    %p107 = scmp.eq.s32.totalorder %s17, 1
    %p108 = por %p106, %p107
    %p110 = scmp.ne.s32.totalorder %s95, %s109
    %p111 = scmp.eq.s32.totalorder %s17, 0
    %p112 = por %p110, %p111
    %s114 = sadd.s32 %s113, 1
    %p117 = scmp.eq.s32.totalorder %s11, 1
    %p118 = scmp.ne.s32.totalorder %s113, %s115
    %p119 = scmp.eq.s32.totalorder %s11, 0
    %p120 = por %p118, %p119
    %p121 = scmp.ne.s32.totalorder %s113, %s115
    %p122 = scmp.eq.s32.totalorder %s16, 1
    %p123 = por %p121, %p122
    %p124 = scmp.ne.s32.totalorder %s115, %s116
    %p125 = scmp.eq.s32.totalorder %s16, 0
    %p126 = por %p124, %p125
    %p127 = scmp.ne.s32.totalorder %s115, %s116
    %p128 = scmp.eq.s32.totalorder %s17, 1
    %p129 = por %p127, %p128
    %p131 = scmp.ne.s32.totalorder %s116, %s130
    %p132 = scmp.eq.s32.totalorder %s17, 0
    %p133 = por %p131, %p132
    %s134 = ssub.s32 %s11, %s18
    %p135 = scmp.eq.s32.totalorder %s134, 0
    %s137 = sadd.s32 %s136, 1
    %s138 = scalar_select %p135, %s136, %s137
    %p141 = pneg %p135
    %p142 = scmp.eq.s32.totalorder %s11, 1
    %p143 = por %p141, %p142
    %p144 = scmp.ne.s32.totalorder %s136, %s139
    %p145 = scmp.eq.s32.totalorder %s11, 0
    %p146 = por %p144, %p145
    %p147 = scmp.ne.s32.totalorder %s136, %s139
    %p148 = scmp.eq.s32.totalorder %s16, 1
    %p149 = por %p147, %p148
    %p150 = scmp.ne.s32.totalorder %s139, %s140
    %p151 = scmp.eq.s32.totalorder %s16, 0
    %p152 = por %p150, %p151
    %p153 = scmp.ne.s32.totalorder %s139, %s140
    %p154 = scmp.eq.s32.totalorder %s17, 1
    %p155 = por %p153, %p154
    %p157 = scmp.ne.s32.totalorder %s140, %s156
    %p158 = scmp.eq.s32.totalorder %s17, 0
    %p159 = por %p157, %p158
    %p160 = scmp.le.s32.totalorder 1, %s11
    %p161 = scmp.lt.s32.totalorder %s11, 3
    %p162 = pnand %p160, %p161
    %p163 = pneg %p162
    // Predicated region
    $region9: #{scalar_so3_linear_cw.1} parent=5 // pred_check
      _
    $region10: #{scalar_so3_linear_cw.1} parent=5 // pred_check_branch
      %165 = sbr.rel (%p162) target = $region12
    $region11: #{scalar_so3_linear_cw.1} parent=5 // pred_region
      %s166 = ssub.s32 %s11, 1
      // Predicated region
      $region13: #{scalar_so3_linear_cw.1} parent=11 // pred_check
        %p167 = pneg %p84
      $region14: #{scalar_so3_linear_cw.1} parent=11 // pred_check_branch
        %169 = sbr.rel (%p167) target = $region16
      $region15: #{scalar_so3_linear_cw.1} parent=11 // pred_region
        _
      $region16: #{scalar_so3_linear_cw.1} parent=11 // pred_fallthru
        _
      // Predicated region
      $region17: #{scalar_so3_linear_cw.1} parent=11 // pred_check
        %p170 = pneg %p105
      $region18: #{scalar_so3_linear_cw.1} parent=11 // pred_check_branch
        %172 = sbr.rel (%p170) target = $region20
      $region19: #{scalar_so3_linear_cw.1} parent=11 // pred_region
        _
      $region20: #{scalar_so3_linear_cw.1} parent=11 // pred_fallthru
        _
      // Predicated region
      $region21: #{scalar_so3_linear_cw.1} parent=11 // pred_check
        %p173 = pneg %p126
      $region22: #{scalar_so3_linear_cw.1} parent=11 // pred_check_branch
        %175 = sbr.rel (%p173) target = $region24
      $region23: #{scalar_so3_linear_cw.1} parent=11 // pred_region
        _
      $region24: #{scalar_so3_linear_cw.1} parent=11 // pred_fallthru
        _
    $region12: #{scalar_so3_linear_cw.1} parent=5 // pred_fallthru
      _
    %p176 = scmp.lt.s32.totalorder %s11, 2
    // Predicated region
    $region25: #{scalar_so3_linear_cw.1} parent=5 // pred_check
      %p177 = pneg %p176
    $region26: #{scalar_so3_linear_cw.1} parent=5 // pred_check_branch
      %179 = sbr.rel (%p177) target = $region28
    $region27: #{scalar_so3_linear_cw.1} parent=5 // pred_region
      // Predicated region
      $region29: #{scalar_so3_linear_cw.1} parent=27 // pred_check
        %p180 = pneg %p31
      $region30: #{scalar_so3_linear_cw.1} parent=27 // pred_check_branch
        %182 = sbr.rel (%p180) target = $region32
      $region31: #{scalar_so3_linear_cw.1} parent=27 // pred_region
        %s183 = smul.u32 2, %s11
        %p184 = scmp.lt.s32.totalorder %s183, 3
        %s185 = scalar_select %p184, %s183, 3
        %s186 = smul.addr %s185, 8
        %s187 = scalar_lea.vmem %s0, %s186
        %s188 = smul.u32 2, %s11
      $region32: #{scalar_so3_linear_cw.1} parent=27 // pred_fallthru
        _
      // Predicated region
      $region33: #{scalar_so3_linear_cw.1} parent=27 // pred_check
        %p189 = pneg %p57
      $region34: #{scalar_so3_linear_cw.1} parent=27 // pred_check_branch
        %191 = sbr.rel (%p189) target = $region36
      $region35: #{scalar_so3_linear_cw.1} parent=27 // pred_region
        %s192 = smul.u32 2, %s11
        %p193 = scmp.lt.s32.totalorder %s192, 3
        %s194 = scalar_select %p193, %s192, 3
        %s195 = smul.addr %s194, 8
        %s196 = scalar_lea.vmem %s1, %s195
        %s197 = smul.u32 2, %s11
      $region36: #{scalar_so3_linear_cw.1} parent=27 // pred_fallthru
        _
    $region28: #{scalar_so3_linear_cw.1} parent=5 // pred_fallthru
      _
    %p198 = scmp.le.s32.totalorder 1, %s11
    %p199 = scmp.lt.s32.totalorder %s11, 3
    %p200 = pnand %p198, %p199
    %p201 = pneg %p200
    // Predicated region
    $region37: #{scalar_so3_linear_cw.1} parent=5 // pred_check
      _
    $region38: #{scalar_so3_linear_cw.1} parent=5 // pred_check_branch
      %203 = sbr.rel (%p200) target = $region40
    $region39: #{scalar_so3_linear_cw.1} parent=5 // pred_region
      %s204 = ssub.s32 %s11, 1
      %s205 = smul.u32 2, %s16
      %p206 = scmp.lt.s32.totalorder %s205, 3
      %s207 = scalar_select %p206, %s205, 3
      %s208 = smul.addr %s207, 8
      %s209 = scalar_lea.vmem %s0, %s208
      %p210 = pneg %p37
      %p211 = pneg %p34
      %s212 = smul.u32 2, %s16
      %p213 = scmp.lt.s32.totalorder %s212, 3
      %s214 = scalar_select %p213, %s212, 3
      %s215 = smul.addr %s214, 8
      %s216 = scalar_lea.vmem %s1, %s215
      %p217 = pneg %p63
      %p218 = pneg %p60
      %p219 = pneg %p84
      %p220 = pneg %p81
      %p221 = pneg %p105
      %p222 = pneg %p102
      %p223 = pneg %p126
      %p224 = pneg %p123
      %p225 = pneg %p152
      %p226 = pneg %p149
      %s227 = smul.u32 2, %s16
      %p228 = scmp.lt.s32.totalorder %s227, 3
      %s229 = scalar_select %p228, %s227, 3
      %s230 = smul.addr %s229, 8
      %s231 = scalar_lea.vmem %s5, %s230
      %s232 = smul.u32 2, %s16
      %p233 = scmp.lt.s32.totalorder %s232, 3
      %s234 = scalar_select %p233, %s232, 3
      %s235 = smul.addr %s234, 8
      %s236 = scalar_lea.vmem %s0, %s235
      %s237 = smul.u32 2, %s16
      %s238 = smul.u32 2, %s16
      %p239 = scmp.lt.s32.totalorder %s238, 3
      %s240 = scalar_select %p239, %s238, 3
      %s241 = smul.addr %s240, 8
      %s242 = scalar_lea.vmem %s1, %s241
      %s243 = smul.u32 2, %s16
      %s244 = smul.u32 2, %s16
      %p245 = scmp.lt.s32.totalorder %s244, 3
      %s246 = scalar_select %p245, %s244, 3
      %s247 = smul.addr %s246, 8
      %s248 = scalar_lea.vmem %s5, %s247
      %s249 = smul.u32 2, %s16
      %v250 = vld [vmem:[%s242] sm:$0xff]
      %v251 = vld [vmem:[%s242 + $0x8] sm:$0xff]
      %v252 = vld [vmem:[%s2] sm:$0xff]
      %v253 = vld [vmem:[%s2 + $0x8] sm:$0xff]
      %vm254 = vcmask 130048
      %v256 = vsel %vm254, %v250, 0
      %v259 = vsel %vm254, %v251, 0
      %261 = vmatprep.subr.mxu0 0.0
      %262 = vmatpush1.msra.mxu0 %v252
      %263 = vmatprep.subr.mxu0 0.0
      %264 = vmatpush1.msra.mxu0 %v253
      %265 = vmatprep.subr.mxu0 0.0
      %266 = vmatpush1.msra.mxu0 0.0
      %267 = vmatprep.subr.mxu0 0.0
      %268 = vmatpush1.msra.mxu0 0.0
      %269 = vmatprep.subr.mxu0 0.0
      %270 = vmatpush1.msra.mxu0 0.0
      %271 = vmatprep.subr.mxu0 0.0
      %272 = vmatpush1.msra.mxu0 0.0
      %273 = vmatprep.subr.mxu0 0.0
      %274 = vmatpush1.msra.mxu0 0.0
      %275 = vmatprep.subr.mxu0 0.0
      %276 = vmatpush1.msra.mxu0 0.0
      %277 = vmatprep.subr.mxu0 0.0
      %278 = vmatpush1.msra.mxu0 0.0
      %279 = vmatprep.subr.mxu0 0.0
      %280 = vmatpush1.msra.mxu0 0.0
      %281 = vmatprep.subr.mxu0 0.0
      %282 = vmatpush1.msra.mxu0 0.0
      %283 = vmatprep.subr.mxu0 0.0
      %284 = vmatpush1.msra.mxu0 0.0
      %285 = vmatprep.subr.mxu0 0.0
      %286 = vmatpush1.msra.mxu0 0.0
      %287 = vmatprep.subr.mxu0 0.0
      %288 = vmatpush1.msra.mxu0 0.0
      %289 = vmatprep.subr.mxu0 0.0
      %290 = vmatpush1.msra.mxu0 0.0
      %291 = vmatprep.subr.mxu0 0.0
      %292 = vmatpush1.msra.mxu0 0.0
      %293 = vmatprep.subr.mxu0 0.0
      %294 = vmatpush1.msra.mxu0 0.0
      %295 = vmatprep.subr.mxu0 0.0
      %296 = vmatpush1.msra.mxu0 0.0
      %297 = vmatprep.subr.mxu0 0.0
      %298 = vmatpush1.msra.mxu0 0.0
      %299 = vmatprep.subr.mxu0 0.0
      %300 = vmatpush1.msra.mxu0 0.0
      %301 = vmatprep.subr.mxu0 0.0
      %302 = vmatpush1.msra.mxu0 0.0
      %303 = vmatprep.subr.mxu0 0.0
      %304 = vmatpush1.msra.mxu0 0.0
      %305 = vmatprep.subr.mxu0 0.0
      %306 = vmatpush1.msra.mxu0 0.0
      %307 = vmatprep.subr.mxu0 0.0
      %308 = vmatpush1.msra.mxu0 0.0
      %309 = vmatprep.subr.mxu0 0.0
      %310 = vmatpush1.msra.mxu0 0.0
      %311 = vmatprep.subr.mxu0 0.0
      %312 = vmatpush1.msra.mxu0 0.0
      %313 = vmatprep.subr.mxu0 0.0
      %314 = vmatpush1.msra.mxu0 0.0
      %315 = vmatprep.subr.mxu0 0.0
      %316 = vmatpush1.msra.mxu0 0.0
      %317 = vmatprep.subr.mxu0 0.0
      %318 = vmatpush1.msra.mxu0 0.0
      %319 = vmatprep.subr.mxu0 0.0
      %320 = vmatpush1.msra.mxu0 0.0
      %321 = vmatprep.subr.mxu0 0.0
      %322 = vmatpush1.msra.mxu0 0.0
      %323 = vmatprep.subr.mxu0 0.0
      %324 = vmatpush1.msra.mxu0 0.0
      %325 = vmatprep.mubr.f32.mxu0 0.0
      %326 = vmatmul.mubr.f32.gmra.mrb[0].mxu0 %v256
      %v327 = vpop.f32.mrb[0].mxu0
      %v328 = vadd.f32 0.0, %v327
      %v329 = vpop.f32.mrb[0].mxu0
      %330 = vmatprep.mubr.f32.mxu0 0.0
      %331 = vmatmul.mubr.f32.gmra.mrb[0].mxu0 %v259
      %v332 = vpop.f32.mrb[0].mxu0
      %v333 = vadd.f32 0.0, %v332
      %v334 = vpop.f32.mrb[0].mxu0
      %335 = vdwg.mxu0
      %v336 = vld [vmem:[%s236] sm:$0xff]
      %v337 = vld [vmem:[%s236 + $0x8] sm:$0xff]
      %v338 = vmul.f32 %v336, %v328
      %v339 = vmul.f32 %v337, %v333
      %v340 = vld [vmem:[%s3] sm:$0xff]
      %v341 = vld [vmem:[%s3 + $0x8] sm:$0xff]
      %v342 = vld [vmem:[%s3 + $0x10] sm:$0xff]
      %v343 = vld [vmem:[%s3 + $0x18] sm:$0xff]
      %v344 = vld [vmem:[%s3 + $0x20] sm:$0xff]
      %v345 = vld [vmem:[%s3 + $0x28] sm:$0xff]
      %v346 = vld [vmem:[%s3 + $0x30] sm:$0xff]
      %v347 = vld [vmem:[%s3 + $0x38] sm:$0xff]
      %v348 = vld [vmem:[%s3 + $0x40] sm:$0xff]
      %v349 = vld [vmem:[%s3 + $0x48] sm:$0xff]
      %v350 = vld [vmem:[%s3 + $0x50] sm:$0xff]
      %v351 = vld [vmem:[%s3 + $0x58] sm:$0xff]
      %v352 = vld [vmem:[%s3 + $0x60] sm:$0xff]
      %v353 = vld [vmem:[%s3 + $0x68] sm:$0xff]
      %v354 = vld [vmem:[%s3 + $0x70] sm:$0xff]
      %v355 = vld [vmem:[%s3 + $0x78] sm:$0xff]
      %356 = vmatprep.subr.mxu0 0.0
      %357 = vmatpush1.msra.mxu0 %v340
      %358 = vmatprep.subr.mxu0 0.0
      %359 = vmatpush1.msra.mxu0 %v341
      %360 = vmatprep.subr.mxu0 0.0
      %361 = vmatpush1.msra.mxu0 %v342
      %362 = vmatprep.subr.mxu0 0.0
      %363 = vmatpush1.msra.mxu0 %v343
      %364 = vmatprep.subr.mxu0 0.0
      %365 = vmatpush1.msra.mxu0 %v344
      %366 = vmatprep.subr.mxu0 0.0
      %367 = vmatpush1.msra.mxu0 %v345
      %368 = vmatprep.subr.mxu0 0.0
      %369 = vmatpush1.msra.mxu0 %v346
      %370 = vmatprep.subr.mxu0 0.0
      %371 = vmatpush1.msra.mxu0 %v347
      %372 = vmatprep.subr.mxu0 0.0
      %373 = vmatpush1.msra.mxu0 %v348
      %374 = vmatprep.subr.mxu0 0.0
      %375 = vmatpush1.msra.mxu0 %v349
      %376 = vmatprep.subr.mxu0 0.0
      %377 = vmatpush1.msra.mxu0 %v350
      %378 = vmatprep.subr.mxu0 0.0
      %379 = vmatpush1.msra.mxu0 %v351
      %380 = vmatprep.subr.mxu0 0.0
      %381 = vmatpush1.msra.mxu0 %v352
      %382 = vmatprep.subr.mxu0 0.0
      %383 = vmatpush1.msra.mxu0 %v353
      %384 = vmatprep.subr.mxu0 0.0
      %385 = vmatpush1.msra.mxu0 %v354
      %386 = vmatprep.subr.mxu0 0.0
      %387 = vmatpush1.msra.mxu0 %v355
      %388 = vmatprep.subr.mxu0 0.0
      %389 = vmatpush1.msra.mxu0 0.0
      %390 = vmatprep.subr.mxu0 0.0
      %391 = vmatpush1.msra.mxu0 0.0
      %392 = vmatprep.subr.mxu0 0.0
      %393 = vmatpush1.msra.mxu0 0.0
      %394 = vmatprep.subr.mxu0 0.0
      %395 = vmatpush1.msra.mxu0 0.0
      %396 = vmatprep.subr.mxu0 0.0
      %397 = vmatpush1.msra.mxu0 0.0
      %398 = vmatprep.subr.mxu0 0.0
      %399 = vmatpush1.msra.mxu0 0.0
      %400 = vmatprep.subr.mxu0 0.0
      %401 = vmatpush1.msra.mxu0 0.0
      %402 = vmatprep.subr.mxu0 0.0
      %403 = vmatpush1.msra.mxu0 0.0
      %404 = vmatprep.subr.mxu0 0.0
      %405 = vmatpush1.msra.mxu0 0.0
      %406 = vmatprep.subr.mxu0 0.0
      %407 = vmatpush1.msra.mxu0 0.0
      %408 = vmatprep.subr.mxu0 0.0
      %409 = vmatpush1.msra.mxu0 0.0
      %410 = vmatprep.subr.mxu0 0.0
      %411 = vmatpush1.msra.mxu0 0.0
      %412 = vmatprep.subr.mxu0 0.0
      %413 = vmatpush1.msra.mxu0 0.0
      %414 = vmatprep.subr.mxu0 0.0
      %415 = vmatpush1.msra.mxu0 0.0
      %416 = vmatprep.subr.mxu0 0.0
      %417 = vmatpush1.msra.mxu0 0.0
      %418 = vmatprep.subr.mxu0 0.0
      %419 = vmatpush1.msra.mxu0 0.0
      %420 = vmatprep.mubr.f32.mxu0 0.0
      %421 = vmatmul.mubr.f32.gmra.mrb[0].mxu0 %v338
      %v422 = vpop.f32.mrb[0].mxu0
      %v423 = vadd.f32 0.0, %v422
      %v424 = vpop.f32.mrb[0].mxu0
      %425 = vmatprep.mubr.f32.mxu0 0.0
      %426 = vmatmul.mubr.f32.gmra.mrb[0].mxu0 %v339
      %v427 = vpop.f32.mrb[0].mxu0
      %v428 = vadd.f32 0.0, %v427
      %v429 = vpop.f32.mrb[0].mxu0
      %430 = vdwg.mxu0
      %v431 = vld [vmem:[%s4] sm:$0x1]
      %v433 = vlaneseq
      %v434 = vshrl.u32 %v433, 7
      %v435 = vsub.s32 0, %v434
      %v436 = vrot.slane %v431, %v435
      %v438 = vmul.f32 %v423, %v436
      %v439 = vmul.f32 %v428, %v436
      %vm440 = vcmask 261120
      %441 = vst.msk [vmem:[%s248] sm:$0xff] %vm440, %v438
      %442 = vst.msk [vmem:[%s248 + $0x8] sm:$0xff] %vm440, %v439
      %s443 = smul.u32 2, %s16
      %p444 = scmp.lt.s32.totalorder %s443, 3
      %s445 = scalar_select %p444, %s443, 3
      %s446 = smul.addr %s445, 8
      %s447 = scalar_lea.vmem %s5, %s446
      // Predicated region
      $region41: #{scalar_so3_linear_cw.1} parent=39 // pred_check
        %p448 = pneg %p149
      $region42: #{scalar_so3_linear_cw.1} parent=39 // pred_check_branch
        %450 = sbr.rel (%p448) target = $region44
      $region43: #{scalar_so3_linear_cw.1} parent=39 // pred_region
        %s451 = smul.u32 2, %s16
      $region44: #{scalar_so3_linear_cw.1} parent=39 // pred_fallthru
        _
    $region40: #{scalar_so3_linear_cw.1} parent=5 // pred_fallthru
      _
    %p452 = scmp.le.s32.totalorder 2, %s11
    // Predicated region
    $region45: #{scalar_so3_linear_cw.1} parent=5 // pred_check
      %p453 = pneg %p452
    $region46: #{scalar_so3_linear_cw.1} parent=5 // pred_check_branch
      %455 = sbr.rel (%p453) target = $region48
    $region47: #{scalar_so3_linear_cw.1} parent=5 // pred_region
      %s456 = ssub.s32 %s11, 2
      // Predicated region
      $region49: #{scalar_so3_linear_cw.1} parent=47 // pred_check
        %p457 = pneg %p155
      $region50: #{scalar_so3_linear_cw.1} parent=47 // pred_check_branch
        %459 = sbr.rel (%p457) target = $region52
      $region51: #{scalar_so3_linear_cw.1} parent=47 // pred_region
        %s460 = smul.u32 2, %s17
        %p461 = scmp.lt.s32.totalorder %s460, 3
        %s462 = scalar_select %p461, %s460, 3
        %s463 = smul.addr %s462, 8
        %s464 = scalar_lea.vmem %s5, %s463
      $region52: #{scalar_so3_linear_cw.1} parent=47 // pred_fallthru
        _
    $region48: #{scalar_so3_linear_cw.1} parent=5 // pred_fallthru
      _
  $region6: #{scalar_so3_linear_cw.1} parent=0 // loop_footer
    %s15 = sadd.s32 1, %s11
  $region7: #{scalar_so3_linear_cw.1} parent=0 // loop_footer_branch
    %10 = sbr.rel target = $region3
  $region8: #{scalar_so3_linear_cw.1} parent=0 // loop_exit
    _

</llo_original>
